<compile_context>
chip_gen: v7x
topology: tpu7x:2x2x1
jax: 0.10.0
libtpu: 0.0.40
codegen_flags: <defaults>
</compile_context>

<pallas_src>
import functools

import jax
import jax.numpy as jnp
from jax import lax
from jax.experimental import pallas as pl
from jax.experimental.pallas import tpu as pltpu


def _round_up(v, m):
    return ((v + m - 1) // m) * m


def _combined_loss_kernel(x_ref, partial_ref, *,
                          tile_rows, sub_rows, lanes, rows, inner,
                          first_partial_chunk, need_mask, f0, f1, f2):
    """Grid = (num_splits [parallel], inner [arbitrary / reduction axis]).

    x_ref       : VMEM [tile_rows, lanes]      current input tile (input dtype)
    partial_ref : VMEM f32[1, sub_rows, lanes] per-split accumulator (output
                  block, revisited across the reduction axis).
    """
    c = pl.program_id(0)
    i = pl.program_id(1)
    g = c * inner + i                      # logical (unclamped) chunk index

    @pl.when(i == 0)
    def _init():
        partial_ref[...] = jnp.zeros_like(partial_ref)

    # Factors are fixed at module construction; fold them into the two Huber
    # branches.  weighted(x) = f0*x^2 + f1*|x| + f2*smooth_l1(x)
    #   |x| <  1 : (f0 + 0.5*f2)*x^2 + f1*|x|  = |x|*(a_small*|x| + f1)
    #   |x| >= 1 : f0*x^2 + (f1 + f2)*|x| - 0.5*f2
    a_small = f0 + 0.5 * f2
    b_big = f1 + f2
    c_big = -0.5 * f2

    n_sub = tile_rows // sub_rows

    def tile_sum(masked):
        def body(s, acc):
            start = pl.multiple_of(s * sub_rows, sub_rows)
            x = x_ref[pl.ds(start, sub_rows), :].astype(jnp.float32)
            absx = jnp.abs(x)
            small = absx * (a_small * absx + f1)
            big = b_big * absx + c_big
            if f0 != 0.0:                  # dead for this module (f0 == 0)
                big = big + f0 * (x * x)
            w = jnp.where(absx < 1.0, small, big)
            if masked:
                # Zero contributions from rows past the real end of the input.
                # Stale/NaN bits in the out-of-range part of the edge block are
                # discarded by the select, so they cannot propagate.
                row = (g * tile_rows + start) + lax.broadcasted_iota(
                    jnp.int32, (sub_rows, lanes), 0)
                w = jnp.where(row < rows, w, 0.0)
            return acc + w

        return lax.fori_loop(0, n_sub, body,
                             jnp.zeros((sub_rows, lanes), jnp.float32))

    if not need_mask:
        partial_ref[0] += tile_sum(False)
    elif first_partial_chunk == 0:
        # Single (partial) chunk: only the masked path exists.
        partial_ref[0] += tile_sum(True)
    else:
        @pl.when(g < first_partial_chunk)
        def _full_tiles():
            partial_ref[0] += tile_sum(False)

        @pl.when(g >= first_partial_chunk)
        def _ragged_tiles():
            partial_ref[0] += tile_sum(True)


def combined_loss(x, factors, *, max_tile_rows=8192, lanes=128):
    """Pallas implementation of CombinedLoss.forward.

    x       : [B, C, H, W] (any float dtype; NCHW like the PyTorch module)
    factors : length-3 sequence/array of loss weights (construction-time
              constants of the module -> baked in statically).
    returns : f32 scalar
    """
    factors = tuple(float(f) for f in jax.device_get(
        jnp.asarray(factors, jnp.float32)))
    if len(factors) != 3:
        raise ValueError("expected 3 loss factors")
    f0, f1, f2 = factors

    total_n = int(x.size)
    x_flat = x.reshape(-1)                  # contiguous flatten, no copy
    pad = (-total_n) % lanes
    if pad:
        # TODO(synk): for huge inputs whose size is not a multiple of 128 this
        # flat pad copies x once in HBM; a manual-DMA tail (memory_space=pl.ANY)
        # would avoid the copy.  Padded zeros contribute 0 to the weighted sum.
        x_flat = jnp.pad(x_flat, (0, pad))
    rows = x_flat.shape[0] // lanes
    x2d = x_flat.reshape(rows, lanes)

    # Row alignment = sublane packing of the input dtype (f32->8, bf16->16, 8-bit->32).
    packing = max(1, 4 // x.dtype.itemsize)
    row_align = 8 * packing

    if rows <= 64:
        tile_rows = _round_up(rows, row_align)
        sub_rows = tile_rows
    else:
        tile_rows = min(max_tile_rows,
                        _round_up(rows, max(64, row_align)))
        sub_rows = 64

    n_chunks = pl.cdiv(rows, tile_rows)
    # Always split the reduction 2 ways when possible: shards across the two
    # TensorCores of a v7x chip; on v5e/v6e it is just a 2-iteration outer loop.
    num_splits = 2 if n_chunks >= 2 else 1
    inner = pl.cdiv(n_chunks, num_splits)
    first_partial_chunk = rows // tile_rows
    need_mask = (num_splits * inner * tile_rows != rows)
    # Row ids are computed in int32 inside the kernel.
    assert num_splits * inner * tile_rows < 2**31

    kernel = functools.partial(
        _combined_loss_kernel,
        tile_rows=tile_rows, sub_rows=sub_rows, lanes=lanes, rows=rows,
        inner=inner, first_partial_chunk=first_partial_chunk,
        need_mask=need_mask, f0=f0, f1=f1, f2=f2)

    def x_index_map(c, i):
        # Self-clamp chunk indices that fall entirely past the end (possible
        # when n_chunks is odd and the 2-way split overhangs); their data is
        # irrelevant because the row mask zeroes the whole contribution.
        return (jnp.minimum(c * inner + i, n_chunks - 1), 0)

    partials = pl.pallas_call(
        kernel,
        out_shape=jax.ShapeDtypeStruct((num_splits, sub_rows, lanes),
                                       jnp.float32),
        grid_spec=pltpu.PrefetchScalarGridSpec(
            num_scalar_prefetch=0,
            grid=(num_splits, inner),
            in_specs=[pl.BlockSpec((tile_rows, lanes), x_index_map)],
            out_specs=pl.BlockSpec((1, sub_rows, lanes),
                                   lambda c, i: (c, 0, 0)),
        ),
        compiler_params=pltpu.CompilerParams(
            dimension_semantics=("parallel", "arbitrary")),
    )(x2d)

    # Tiny final cross-lane reduce + the 1/N of the three `mean`s.
    return jnp.sum(partials) / jnp.float32(total_n)


def combined_loss_ref(x, factors):
    """Pure-JAX reference (mirrors the PyTorch semantics)."""
    xf = x.astype(jnp.float32)
    absx = jnp.abs(xf)
    loss_mse = jnp.mean(xf * xf)
    loss_l1 = jnp.mean(absx)
    loss_sl1 = jnp.mean(jnp.where(absx < 1.0, 0.5 * xf * xf, absx - 0.5))
    losses = jnp.stack([loss_mse, loss_l1, loss_sl1])
    return jnp.sum(losses * jnp.asarray(factors, jnp.float32))


if __name__ == "__main__":
    num_losses = 3
    # Mirrors __init__: factor = [i / len(losses) for i in range(len(losses))]
    factors = jnp.array([i / num_losses for i in range(num_losses)],
                        dtype=jnp.float32)

    key = jax.random.PRNGKey(0)
    k1, k2, k3, k4 = jax.random.split(key, 4)

    def check(xv, name):
        out = jax.block_until_ready(combined_loss(xv, factors))
        ref = combined_loss_ref(xv, factors)
        assert jnp.allclose(out, ref, rtol=1e-4, atol=1e-6), (name, out, ref)

    # 1) Primary (small) case: NCHW [2, 4, 16, 16] -- single full tile, no mask.
    x = jax.random.normal(k1, (2, 4, 16, 16), dtype=jnp.float32)
    check(x, "small_f32")

    # 2) Large case: rows=16896, tile_rows=8192 -> 3 chunks, 2-way split with an
    #    odd chunk count (clamped overhang block), ragged-tail row mask.
    x2 = jax.random.normal(k2, (32, 16, 64, 66), dtype=jnp.float32)
    check(x2, "large_f32")

    # 3) Size not divisible by 128 -> wrapper pad fallback + full row mask.
    x3 = jax.random.normal(k3, (3, 5, 7, 6), dtype=jnp.float32)
    check(x3, "ragged_f32")

    # 4) bf16 input: fed through the BlockSpec unconverted (half HBM traffic),
    #    bf16 sublane-packing row alignment, ragged row mask.
    x4 = jax.random.normal(k4, (2, 4, 10, 16), dtype=jnp.float32).astype(jnp.bfloat16)
    check(x4, "small_bf16")

    print("KERNEL_OK")
</pallas_src>

<mosaic_0001>
module attributes {stable_mosaic.version = 11 : i64} {
  func.func @_combined_loss_kernel(%arg0: i32, %arg1: i32, %arg2: memref<16x128xf32, #tpu.memory_space<vmem>>, %arg3: memref<1x16x128xf32, #tpu.memory_space<vmem>>) attributes {dimension_semantics = [#tpu.dimension_semantics<parallel>, #tpu.dimension_semantics<arbitrary>], iteration_bounds = array<i64: 1, 1>, scalar_prefetch = 0 : i64, scratch_operands = 0 : i64, tpu.core_type = #tpu.core_type<tc>, window_params = [{transform_indices = @transform_0, window_bounds = array<i64: 16, 128>}, {transform_indices = @transform_1, window_bounds = array<i64: 1, 16, 128>}]} {
    %c0_i32 = arith.constant 0 : i32
    %0 = arith.cmpi eq, %arg1, %c0_i32 : i32
    %1 = arith.extui %0 : i1 to i32
    %c0_i32_0 = arith.constant 0 : i32
    %2 = arith.cmpi ne, %1, %c0_i32_0 : i32
    scf.if %2 {
      %cst_13 = arith.constant 0.000000e+00 : f32
      %28 = vector.broadcast %cst_13 : f32 to vector<1x16x128xf32>
      %c0_14 = arith.constant 0 : index
      %c0_15 = arith.constant 0 : index
      %c0_16 = arith.constant 0 : index
      %29 = vector.load %arg3[%c0_14, %c0_15, %c0_16] : memref<1x16x128xf32, #tpu.memory_space<vmem>>, vector<1x16x128xf32>
      tpu.vector_store %arg3[%c0_14, %c0_15, %c0_16], %28 {strides = array<i32>} : memref<1x16x128xf32, #tpu.memory_space<vmem>>, vector<1x16x128xf32>,
    } else {
    }
    %c0 = arith.constant 0 : index
    %c0_1 = arith.constant 0 : index
    %c0_2 = arith.constant 0 : index
    %3 = vector.load %arg3[%c0, %c0_1, %c0_2] : memref<1x16x128xf32, #tpu.memory_space<vmem>>, vector<1x16x128xf32>
    %4 = vector.shape_cast %3 : vector<1x16x128xf32> to vector<16x128xf32>
    %cst = arith.constant 0.000000e+00 : f32
    %5 = vector.broadcast %cst : f32 to vector<16x128xf32>
    %c0_i32_3 = arith.constant 0 : i32
    %c16_i32 = arith.constant 16 : i32
    %6 = arith.muli %c0_i32_3, %c16_i32 : i32
    %7 = tpu.assume_multiple %6, 16 : i32
    %8 = arith.index_cast %7 : i32 to index
    %c0_4 = arith.constant 0 : index
    %9 = vector.load %arg2[%8, %c0_4] : memref<16x128xf32, #tpu.memory_space<vmem>>, vector<16x128xf32>
    %10 = math.absf %9 : vector<16x128xf32>
    %cst_5 = arith.constant 0.333333343 : f32
    %11 = vector.broadcast %cst_5 : f32 to vector<16x128xf32>
    %12 = arith.mulf %11, %10 : vector<16x128xf32>
    %cst_6 = arith.constant 0.333333343 : f32
    %13 = vector.broadcast %cst_6 : f32 to vector<16x128xf32>
    %14 = arith.addf %12, %13 : vector<16x128xf32>
    %15 = arith.mulf %10, %14 : vector<16x128xf32>
    %cst_7 = arith.constant 1.000000e+00 : f32
    %16 = vector.broadcast %cst_7 : f32 to vector<16x128xf32>
    %17 = arith.mulf %16, %10 : vector<16x128xf32>
    %cst_8 = arith.constant -0.333333343 : f32
    %18 = vector.broadcast %cst_8 : f32 to vector<16x128xf32>
    %19 = arith.addf %17, %18 : vector<16x128xf32>
    %cst_9 = arith.constant 1.000000e+00 : f32
    %20 = vector.broadcast %cst_9 : f32 to vector<16x128xf32>
    %21 = arith.cmpf olt, %10, %20 : vector<16x128xf32>
    %22 = arith.select %21, %15, %19 : vector<16x128xi1>, vector<16x128xf32>
    %23 = arith.addf %5, %22 : vector<16x128xf32>
    %c1_i32 = arith.constant 1 : i32
    %24 = arith.addf %4, %23 : vector<16x128xf32>
    %c0_10 = arith.constant 0 : index
    %c0_11 = arith.constant 0 : index
    %c0_12 = arith.constant 0 : index
    %25 = vector.load %arg3[%c0_10, %c0_11, %c0_12] : memref<1x16x128xf32, #tpu.memory_space<vmem>>, vector<1x16x128xf32>
    %26 = vector.shape_cast %25 : vector<1x16x128xf32> to vector<16x128xf32>
    %27 = vector.shape_cast %24 : vector<16x128xf32> to vector<1x16x128xf32>
    tpu.vector_store %arg3[%c0_10, %c0_11, %c0_12], %27 {strides = array<i32>} : memref<1x16x128xf32, #tpu.memory_space<vmem>>, vector<1x16x128xf32>,
    return
  }
  func.func @transform_0(%arg0: i32, %arg1: i32) -> (i32, i32) {
    %c1_i32 = arith.constant 1 : i32
    %0 = arith.muli %arg0, %c1_i32 : i32
    %1 = arith.addi %0, %arg1 : i32
    %c0_i32 = arith.constant 0 : i32
    %2 = arith.minsi %1, %c0_i32 : i32
    %c0_i32_0 = arith.constant 0 : i32
    %c0_i32_1 = arith.constant 0 : i32
    return %2, %c0_i32_0 : i32, i32
  }
  func.func @transform_1(%arg0: i32, %arg1: i32) -> (i32, i32, i32) {
    %c0_i32 = arith.constant 0 : i32
    %c0_i32_0 = arith.constant 0 : i32
    %c0_i32_1 = arith.constant 0 : i32
    return %arg0, %c0_i32, %c0_i32_0 : i32, i32, i32
  }
}

</mosaic_0001>

<llo_original>
// kernel: tpu_custom_call.1
$region0: #{tpu_custom_call.1}
  #allocation0 [shape = 'u32[]', space=smem, size = 0x4, offset = 0x4, fixed_abs, tag = 'smem constant byte address 0x4 - core index']
  #allocation1 [shape = 'u32[144,128]{1,0:T(1,128)}', space=vmem, size = 0x12000, scoped, tag = 'internal scratch']
  %s0 = inlined_call_operand.hbm [shape: f32[16,128], index: 0, kind: input, shape index: {}]
  %s1 = inlined_call_operand.hbm [shape: f32[1,16,128], index: 1, kind: output, shape index: {}]
  %s2 = sld [smem:[#allocation0]]
  $region22: #{tpu_custom_call.1} parent=0
    _
  %s4 = ssub.s32 1, %s2
  %s5 = scalar_select 0, %s4, %s2
  $region1: #{tpu_custom_call.1} parent=0
    #allocation2 [shape = 'u8[8192]{0}', space=vmem, size = 0x2000, scoped, tag = 'input window, operand 0, single buffered']
    #allocation3 [shape = 's32[1]{0}', space=sflag, size = 0x4, scoped, tag = 'scoped memory for tpu_custom_call.1']
    #allocation4 [shape = 's32[1]{0}', space=sflag, size = 0x4, scoped, tag = 'scoped memory for tpu_custom_call.1']
    #allocation5 [shape = 'u8[8192]{0}', space=vmem, size = 0x2000, scoped, tag = 'output window, operand 0, single buffered']
    %6 = vsyncpa [#allocation3], 0
    %7 = vsyncpa [#allocation4], 0
    // Predicated region
    $region2: #{tpu_custom_call.1} parent=1 // pred_check
      _
    $region3: #{tpu_custom_call.1} parent=1 // pred_check_branch
      %9 = sbr.rel (0) target = $region5
    $region4: #{tpu_custom_call.1} parent=1 // pred_region
      %s10 = sadd.s32 0, 0
      %p11 = scmp.lt.s32.totalorder %s10, 0
      %s12 = scalar_select %p11, %s10, 0
      %s13 = smul.u32 2, %s12
      %s15 = ssub.s32 256, 256
      %16 = vsyncadd [#allocation3], %s15
      %s17 = smul.addr %s13, 128
      %s18 = scalar_lea.hbm %s0, %s17
      %s19 = sshll.u32 [#allocation2], 4
      %s20 = int_to_ptr.vmem [resolvable:$true] %s19
      %25 = dma.hbm_to_vmem [thread:$0]  %s18, 256, %s20, [#allocation3], 128, 128, 8
    $region5: #{tpu_custom_call.1} parent=1 // pred_fallthru
      _
    // Predicated region
    $region6: #{tpu_custom_call.1} parent=1 // pred_check
      _
    $region7: #{tpu_custom_call.1} parent=1 // pred_check_branch
      %27 = sbr.rel (0) target = $region9
    $region8: #{tpu_custom_call.1} parent=1 // pred_region
      %28 = dma.done [#allocation3], 256
    $region9: #{tpu_custom_call.1} parent=1 // pred_fallthru
      _
    %s29 = sadd.s32 0, 0
    %p30 = scmp.lt.s32.totalorder %s29, 0
    %s31 = scalar_select %p30, %s29, 0
    %s32 = smul.u32 2, %s31
    %p33 = scmp.eq.s32.totalorder 0, 0
    // Predicated region
    $region10: #{tpu_custom_call.1} parent=1 // pred_check
      %p34 = pneg %p33
    $region11: #{tpu_custom_call.1} parent=1 // pred_check_branch
      %36 = sbr.rel (%p34) target = $region13
    $region12: #{tpu_custom_call.1} parent=1 // pred_region
      %37 = vst [vmem:[#allocation5] sm:$0xff] 0.0
      %38 = vst [vmem:[#allocation5 + $0x8] sm:$0xff] 0.0
    $region13: #{tpu_custom_call.1} parent=1 // pred_fallthru
      _
    %v39 = vld [vmem:[#allocation5] sm:$0xff]
    %v40 = vld [vmem:[#allocation5 + $0x8] sm:$0xff]
    %v41 = vld [vmem:[#allocation2] sm:$0xff]
    %v42 = vld [vmem:[#allocation2 + $0x8] sm:$0xff]
    %v43 = vand.u32 2147483647, %v41
    %v44 = vand.u32 2147483647, %v42
    %v45 = vmul.f32 %v43, 0.33333334
    %v46 = vmul.f32 %v44, 0.33333334
    %v47 = vadd.f32 %v45, 0.33333334
    %v48 = vadd.f32 %v46, 0.33333334
    %v49 = vmul.f32 %v43, %v47
    %v50 = vmul.f32 %v44, %v48
    %v51 = vadd.f32 %v43, -0.33333334
    %v52 = vadd.f32 %v44, -0.33333334
    %vm53 = vcmp.lt.f32.partialorder %v43, 1.0
    %vm54 = vcmp.lt.f32.partialorder %v44, 1.0
    %v55 = vsel %vm53, %v49, %v51
    %v56 = vsel %vm54, %v50, %v52
    %v57 = vadd.f32 %v55, 0.0
    %v58 = vadd.f32 %v56, 0.0
    %v59 = vadd.f32 %v39, %v57
    %v60 = vadd.f32 %v40, %v58
    %61 = vst [vmem:[#allocation5] sm:$0xff] %v59
    %62 = vst [vmem:[#allocation5 + $0x8] sm:$0xff] %v60
    // Predicated region
    $region14: #{tpu_custom_call.1} parent=1 // pred_check
      _
    $region15: #{tpu_custom_call.1} parent=1 // pred_check_branch
      %64 = sbr.rel (0) target = $region17
    $region16: #{tpu_custom_call.1} parent=1 // pred_region
      %s66 = ssub.s32 256, 256
      %67 = vsyncadd [#allocation4], %s66
      %s68 = sshll.u32 [#allocation5], 4
      %s69 = int_to_ptr.vmem [resolvable:$true] %s68
      %74 = dma.vmem_to_hbm [thread:$0]  %s69, 256, %s1, [#allocation4], 128, 128, 8
    $region17: #{tpu_custom_call.1} parent=1 // pred_fallthru
      _
    // Predicated region
    $region18: #{tpu_custom_call.1} parent=1 // pred_check
      _
    $region19: #{tpu_custom_call.1} parent=1 // pred_check_branch
      %76 = sbr.rel (0) target = $region21
    $region20: #{tpu_custom_call.1} parent=1 // pred_region
      %77 = dma.done [#allocation4], 256
    $region21: #{tpu_custom_call.1} parent=1 // pred_fallthru
      _
    %78 = vsyncpa [#allocation3], 1
    %79 = vsyncpa [#allocation4], 1

</llo_original>
